<compile_context>
chip_gen: v6e
topology: v6e:2x2x1
jax: 0.10.0
libtpu: 0.0.40
codegen_flags: <defaults>
</compile_context>

<pallas_src>
import math

import jax
import jax.numpy as jnp
from jax.experimental import pallas as pl
from jax.experimental.pallas import tpu as pltpu


def _layer_scale_kernel(x_ref, gamma_ref, o_ref):
    # x_ref: (tile_rows, tile_d) VMEM tile; gamma_ref: (1, tile_d) broadcast over rows.
    o_ref[...] = (x_ref[...] * gamma_ref[...]).astype(o_ref.dtype)


def _round_up(a: int, b: int) -> int:
    return (a + b - 1) // b * b


def _tpu_generation_params():
    """Returns (target_block_bytes, vmem_limit_bytes_or_None, num_tensorcores) for the local TPU."""
    kind = ""
    try:
        kind = jax.devices()[0].device_kind.lower()
    except Exception:
        pass
    if "v7" in kind:
        # 2 TCs, 64 MiB VMEM/TC, ~3.2 TB/s HBM: big blocks to amortize ~0.35 us/step overhead,
        # 4 x 7 MiB double-buffered blocks = 28 MiB < 40 MiB scoped limit < 64 MiB physical.
        return 7 * 1024 * 1024, 40 * 1024 * 1024, 2
    if "v6" in kind:
        # 1 TC, 128 MiB VMEM, ~1.4 TB/s HBM: 4 x 5 MiB = 20 MiB, raise scoped limit for headroom.
        return 5 * 1024 * 1024, 48 * 1024 * 1024, 1
    # v5e / unknown: ~0.8 TB/s HBM, 16 MiB scoped-VMEM default -> 2.5 MiB blocks already ~93% roofline.
    return (2 * 1024 * 1024) + (512 * 1024), None, 1


def layer_scale(x: jax.Array, gamma: jax.Array, *, donate_x: bool = False) -> jax.Array:
    """Computes x * gamma (gamma broadcast over the trailing feature dim) via a Pallas TPU kernel."""
    orig_shape = x.shape
    dim = orig_shape[-1]
    assert gamma.shape == (dim,), f"gamma must be shape ({dim},), got {gamma.shape}"

    rows = 1
    for s in orig_shape[:-1]:
        rows *= s
    if rows == 0 or dim == 0:
        # Degenerate empty tensor: nothing to compute.
        return x

    target_block_bytes, vmem_limit_bytes, num_tc = _tpu_generation_params()

    itemsize = jnp.dtype(x.dtype).itemsize
    # Native sublane packing multiple: 8 rows for 32-bit, 16 for 16-bit, 32 for 8-bit dtypes.
    sublane = max(8, 32 // itemsize)

    # ---- Lane-dense folding: make the last (lane) dim a multiple of 128 (or closer to it) ----
    fold = 1
    width = dim
    if dim % 128 != 0:
        k_min = 128 // math.gcd(dim, 128)  # smallest power-of-two k with (k*dim) % 128 == 0
        k = k_min
        while k > 1:
            if rows % k == 0:
                fold = k  # k == k_min -> fully lane-dense; k < k_min -> still better lane alignment
                break
            k //= 2
        width = dim * fold
    rows_f = rows // fold

    x2 = x.reshape(rows_f, width)  # contiguous reshape: free layout plumbing
    if fold > 1:
        gamma_w = jnp.tile(gamma, fold).reshape(1, width)
    else:
        gamma_w = gamma.reshape(1, width)

    # ---- Feature-axis tiling (only when width is a clean multiple of 128 and too wide) ----
    if width % 128 == 0 and width > 128:
        max_d = max(128, ((target_block_bytes // (sublane * itemsize)) // 128) * 128)
        tile_d = min(width, max_d)
    else:
        tile_d = width  # block spans full feature axis (allowed: equals full array dim)

    # ---- Row-axis tiling: size the block by bytes, rounded to the native sublane multiple ----
    if rows_f <= sublane:
        tile_rows = rows_f  # single block equal to the full (small) row axis
    else:
        tile_rows = max(sublane, ((target_block_bytes // (tile_d * itemsize)) // sublane) * sublane)
        tile_rows = min(tile_rows, _round_up(rows_f, sublane))
        # Only v7x (2 TensorCores) benefits from forcing >= 2 parallel row blocks.
        if num_tc > 1 and pl.cdiv(rows_f, tile_rows) < 2:
            tile_rows = max(sublane, _round_up(pl.cdiv(rows_f, 2), sublane))

    # Feature axis OUTER, row axis INNER: gamma's block index only depends on the outer index,
    # so it stays resident in VMEM across the whole inner row loop (no per-step gamma DMA).
    grid = (pl.cdiv(width, tile_d), pl.cdiv(rows_f, tile_rows))

    cost = pl.CostEstimate(
        flops=rows * dim,
        transcendentals=0,
        bytes_accessed=2 * rows * dim * itemsize + dim * jnp.dtype(gamma.dtype).itemsize,
    )

    out = pl.pallas_call(
        _layer_scale_kernel,
        out_shape=jax.ShapeDtypeStruct((rows_f, width), x.dtype),
        grid_spec=pltpu.PrefetchScalarGridSpec(
            num_scalar_prefetch=0,
            grid=grid,
            in_specs=[
                pl.BlockSpec((tile_rows, tile_d), lambda j, i: (i, j)),
                pl.BlockSpec((1, tile_d), lambda j, i: (0, j)),
            ],
            out_specs=pl.BlockSpec((tile_rows, tile_d), lambda j, i: (i, j)),
        ),
        compiler_params=pltpu.CompilerParams(
            dimension_semantics=("parallel", "parallel"),
            vmem_limit_bytes=vmem_limit_bytes,
        ),
        cost_estimate=cost,
        input_output_aliases=({0: 0} if donate_x else {}),
    )(x2, gamma_w)

    return out.reshape(orig_shape)


if __name__ == "__main__":
    key = jax.random.PRNGKey(0)
    init_values = 1e-05

    # Shape implied by the module: [..., dim] activations, gamma = init_values * ones(dim).
    batch, seq, dim = 2, 8, 32
    x = jax.random.normal(key, (batch, seq, dim), dtype=jnp.float32)
    gamma = init_values * jnp.ones((dim,), dtype=jnp.float32)

    y = layer_scale(x, gamma)
    jax.block_until_ready(y)
    y_ref = x * gamma
    assert jnp.allclose(y, y_ref, atol=1e-6, rtol=1e-6)

    # Ragged rows + dim not a multiple of 128 (exercises the fold fallback, no-pad path).
    k2 = jax.random.PRNGKey(1)
    x2 = jax.random.normal(k2, (3, 7, 192), dtype=jnp.float32)
    gamma2 = init_values * jnp.ones((192,), dtype=jnp.float32)
    y2 = layer_scale(x2, gamma2)
    jax.block_until_ready(y2)
    assert jnp.allclose(y2, x2 * gamma2, atol=1e-6, rtol=1e-6)

    # bf16 path (exercises dtype-aware 16-row sublane rounding).
    k3 = jax.random.PRNGKey(2)
    x3 = jax.random.normal(k3, (4, 16, 256), dtype=jnp.bfloat16)
    gamma3 = (init_values * jnp.ones((256,), dtype=jnp.float32)).astype(jnp.bfloat16)
    y3 = layer_scale(x3, gamma3)
    jax.block_until_ready(y3)
    assert jnp.allclose(
        y3.astype(jnp.float32), (x3 * gamma3).astype(jnp.float32), atol=1e-2, rtol=1e-2
    )

    print("KERNEL_OK")
</pallas_src>

<mosaic_0001>
module attributes {stable_mosaic.version = 11 : i64} {
  func.func @_layer_scale_kernel(%arg0: i32, %arg1: i32, %arg2: memref<4x128xf32, #tpu.memory_space<vmem>>, %arg3: memref<1x128xf32, #tpu.memory_space<vmem>>, %arg4: memref<4x128xf32, #tpu.memory_space<vmem>>) attributes {dimension_semantics = [#tpu.dimension_semantics<parallel>, #tpu.dimension_semantics<parallel>], iteration_bounds = array<i64: 1, 1>, scalar_prefetch = 0 : i64, scratch_operands = 0 : i64, tpu.core_type = #tpu.core_type<tc>, window_params = [{transform_indices = @transform_0, window_bounds = array<i64: 4, 128>}, {transform_indices = @transform_1, window_bounds = array<i64: 1, 128>}, {transform_indices = @transform_2, window_bounds = array<i64: 4, 128>}]} {
    %c0 = arith.constant 0 : index
    %c0_0 = arith.constant 0 : index
    %0 = vector.load %arg2[%c0, %c0_0] : memref<4x128xf32, #tpu.memory_space<vmem>>, vector<4x128xf32>
    %c0_1 = arith.constant 0 : index
    %c0_2 = arith.constant 0 : index
    %1 = vector.load %arg3[%c0_1, %c0_2] : memref<1x128xf32, #tpu.memory_space<vmem>>, vector<1x128xf32>
    %2 = vector.broadcast %1 : vector<1x128xf32> to vector<4x128xf32>
    %3 = arith.mulf %0, %2 : vector<4x128xf32>
    %c0_3 = arith.constant 0 : index
    %c0_4 = arith.constant 0 : index
    %4 = vector.load %arg4[%c0_3, %c0_4] : memref<4x128xf32, #tpu.memory_space<vmem>>, vector<4x128xf32>
    tpu.vector_store %arg4[%c0_3, %c0_4], %3 {strides = array<i32>} : memref<4x128xf32, #tpu.memory_space<vmem>>, vector<4x128xf32>,
    return
  }
  func.func @transform_0(%arg0: i32, %arg1: i32) -> (i32, i32) {
    %c0_i32 = arith.constant 0 : i32
    return %arg1, %arg0 : i32, i32
  }
  func.func @transform_1(%arg0: i32, %arg1: i32) -> (i32, i32) {
    %c0_i32 = arith.constant 0 : i32
    %c0_i32_0 = arith.constant 0 : i32
    return %c0_i32, %arg0 : i32, i32
  }
  func.func @transform_2(%arg0: i32, %arg1: i32) -> (i32, i32) {
    %c0_i32 = arith.constant 0 : i32
    return %arg1, %arg0 : i32, i32
  }
}

</mosaic_0001>

<llo_original>
// kernel: tpu_custom_call.1
$region0: #{tpu_custom_call.1}
  #allocation0 [shape = 'u32[]', space=smem, size = 0x4, offset = 0x4, fixed_abs, tag = 'smem constant byte address 0x4 - core index']
  #allocation1 [shape = 'u32[144,128]{1,0:T(1,128)}', space=vmem, size = 0x12000, scoped, tag = 'internal scratch']
  %s0 = inlined_call_operand.hbm [shape: f32[4,128], index: 0, kind: input, shape index: {}]
  %s1 = inlined_call_operand.vmem [shape: f32[1,128], index: 1, kind: input, shape index: {}]
  %s2 = inlined_call_operand.hbm [shape: f32[4,128], index: 2, kind: output, shape index: {}]
  %s3 = sld [smem:[#allocation0]]
  $region22: #{tpu_custom_call.1} parent=0
    _
  %s5 = ssub.s32 1, %s3
  %s6 = scalar_select 0, %s5, %s3
  $region1: #{tpu_custom_call.1} parent=0
    #allocation2 [shape = 'u8[2048]{0}', space=vmem, size = 0x800, scoped, tag = 'input window, operand 0, single buffered']
    #allocation3 [shape = 's32[1]{0}', space=sflag, size = 0x4, scoped, tag = 'scoped memory for tpu_custom_call.1']
    #allocation4 [shape = 's32[1]{0}', space=sflag, size = 0x4, scoped, tag = 'scoped memory for tpu_custom_call.1']
    #allocation5 [shape = 'u8[2048]{0}', space=vmem, size = 0x800, scoped, tag = 'output window, operand 0, single buffered']
    %7 = vsyncpa [#allocation3], 0
    %8 = vsyncpa [#allocation4], 0
    // Predicated region
    $region2: #{tpu_custom_call.1} parent=1 // pred_check
      _
    $region3: #{tpu_custom_call.1} parent=1 // pred_check_branch
      %10 = sbr.rel (0) target = $region5
    $region4: #{tpu_custom_call.1} parent=1 // pred_region
      %s12 = ssub.s32 64, 64
      %13 = vsyncadd [#allocation3], %s12
      %s15 = sshll.u32 [#allocation2], 4
      %s16 = int_to_ptr.vmem [resolvable:$true] %s15
      %18 = dma.hbm_to_vmem [thread:$0]  %s0, 64, %s16, [#allocation3]
    $region5: #{tpu_custom_call.1} parent=1 // pred_fallthru
      _
    // Predicated region
    $region6: #{tpu_custom_call.1} parent=1 // pred_check
      _
    $region7: #{tpu_custom_call.1} parent=1 // pred_check_branch
      %20 = sbr.rel (0) target = $region9
    $region8: #{tpu_custom_call.1} parent=1 // pred_region
      _
    $region9: #{tpu_custom_call.1} parent=1 // pred_fallthru
      _
    // Predicated region
    $region10: #{tpu_custom_call.1} parent=1 // pred_check
      _
    $region11: #{tpu_custom_call.1} parent=1 // pred_check_branch
      %22 = sbr.rel (0) target = $region13
    $region12: #{tpu_custom_call.1} parent=1 // pred_region
      %23 = dma.done [#allocation3], 64
    $region13: #{tpu_custom_call.1} parent=1 // pred_fallthru
      _
    %v24 = vld [vmem:[#allocation2] sm:$0xf]
    %v25 = vld [vmem:[%s1] sm:$0x1]
    %v27 = vlaneseq
    %v28 = vshrl.u32 %v27, 7
    %v29 = vsub.s32 0, %v28
    %v30 = vrot.slane %v25, %v29
    %v32 = vmul.f32 %v24, %v30
    %33 = vst [vmem:[#allocation5] sm:$0xf] %v32
    // Predicated region
    $region14: #{tpu_custom_call.1} parent=1 // pred_check
      _
    $region15: #{tpu_custom_call.1} parent=1 // pred_check_branch
      %35 = sbr.rel (0) target = $region17
    $region16: #{tpu_custom_call.1} parent=1 // pred_region
      %s37 = ssub.s32 64, 64
      %38 = vsyncadd [#allocation4], %s37
      %s40 = sshll.u32 [#allocation5], 4
      %s41 = int_to_ptr.vmem [resolvable:$true] %s40
      %43 = dma.vmem_to_hbm [thread:$0]  %s41, 64, %s2, [#allocation4]
    $region17: #{tpu_custom_call.1} parent=1 // pred_fallthru
      _
    // Predicated region
    $region18: #{tpu_custom_call.1} parent=1 // pred_check
      _
    $region19: #{tpu_custom_call.1} parent=1 // pred_check_branch
      %45 = sbr.rel (0) target = $region21
    $region20: #{tpu_custom_call.1} parent=1 // pred_region
      %46 = dma.done [#allocation4], 64
    $region21: #{tpu_custom_call.1} parent=1 // pred_fallthru
      _
    %47 = vsyncpa [#allocation3], 1
    %48 = vsyncpa [#allocation4], 1

</llo_original>
